<compile_context>
chip_gen: v5e
topology: v5e:2x2
jax: 0.10.0
libtpu: 0.0.40
codegen_flags: <defaults>
</compile_context>

<pallas_src>
import functools

import jax
import jax.numpy as jnp
from jax.experimental import pallas as pl
from jax.experimental.pallas import tpu as pltpu


def _round_up(x, m):
    return (x + m - 1) // m * m


def _sublane_multiple(dtype):
    return {4: 8, 2: 16, 1: 32}.get(jnp.dtype(dtype).itemsize, 8)


def _dsc_loss_kernel(logits_ref, targets_ref, out_ref, acc_ref,
                     *, alpha, smooth, n_total, tile_n, n_inner):
    inner = pl.program_id(1)

    @pl.when(inner == 0)
    def _():
        acc_ref[...] = jnp.zeros_like(acc_ref)

    x = logits_ref[...].astype(jnp.float32)              # (tile_n, C)
    tgt = targets_ref[...]                                # (tile_n, 1) int32

    # Numerically stable softmax numerator/denominator; only the target-class
    # probability is needed, so the full (tn, C) matrix is never normalized:
    #   p = sum(where(col == tgt, e)) / sum(e)   -> one divide per ROW.
    m = jnp.max(x, axis=-1, keepdims=True)
    e = jnp.exp(x - m)
    col = jax.lax.broadcasted_iota(jnp.int32, x.shape, 1)
    num = jnp.sum(jnp.where(col == tgt, e, 0.0), axis=-1, keepdims=True)
    den = jnp.sum(e, axis=-1, keepdims=True)
    p = num / den                                          # (tile_n, 1)

    # (1 - p)^alpha * p, specialized at trace time; clamp 1-p >= 0 for safety.
    one_minus_p = jnp.maximum(1.0 - p, 0.0)
    if alpha == 0.0:
        pf = p
    elif alpha == 1.0:
        pf = one_minus_p * p
    elif float(alpha).is_integer() and 0.0 < alpha <= 4.0:
        w = one_minus_p
        for _ in range(int(alpha) - 1):
            w = w * one_minus_p
        pf = w * p
    else:
        pf = jnp.power(one_minus_p, alpha) * p

    loss = 1.0 - (2.0 * pf + smooth) / (pf + 1.0 + smooth)  # (tile_n, 1)

    # Tail / overhang masking: rows beyond N (padding of a partial block, or a
    # fully-clamped duplicate tile) contribute exactly 0 (safe even if their
    # loaded values are garbage).
    tile_idx = pl.program_id(0) * n_inner + inner
    row0 = tile_idx * tile_n
    rows = row0 + jax.lax.broadcasted_iota(jnp.int32, loss.shape, 0)
    loss = jnp.where(rows < n_total, loss, 0.0)

    # One cross-sublane reduce per inner step into a tiny (1,1) accumulator
    # (XLU slot has slack; avoids a (tn, 1) lane-padded VMEM scratch).
    acc_ref[...] += jnp.sum(loss, axis=0, keepdims=True)

    @pl.when(inner == pl.num_programs(1) - 1)
    def _():
        out_ref[...] = acc_ref[...].reshape(1, 1, 1)


def multi_dsc_loss(logits, targets, *, alpha=1.0, smooth=1.0, reduction="mean",
                   tile_n=None, n_par=2):
    """Pallas TPU implementation of MultiDSCLoss.

    logits:  [N, C] float (f32 or bf16)
    targets: [N]    int (class indices in [0, C))
    returns: scalar f32 loss for reduction in {'mean', 'sum'}
    """
    n, c = logits.shape
    in_itemsize = jnp.dtype(logits.dtype).itemsize
    sub = _sublane_multiple(logits.dtype)
    c_pad = _round_up(c, 128)

    targets2d = targets.astype(jnp.int32).reshape(n, 1)

    # Device-aware VMEM budget; fall back to the smallest per-core VMEM (v7x).
    try:
        vmem_phys = int(pltpu.get_tpu_info().vmem_capacity_bytes)
    except Exception:
        vmem_phys = 64 * 1024 * 1024
    usable_vmem = min(vmem_phys * 7 // 10, 100 * 1024 * 1024)

    # Exact per-row VMEM cost of one tile (lane padding included) plus an
    # allowance for the f32 intermediates Mosaic materializes for the block.
    row_bytes = (2 * c_pad * in_itemsize   # logits double buffer (lane-padded)
                 + 2 * 128 * 4             # int32 targets double buffer (lane-padded)
                 + 5 * c_pad * 4)          # f32 intermediates: x, e, iota, mask, ...
    slack = 1 << 20                        # acc scratch, output, Mosaic internals

    if tile_n is None:
        # Auto-size: ~2 MiB of actual logits HBM bytes per step (amortizes the
        # ~0.35 us per-grid-step cost), clamped to what fits VMEM and to N.
        tn_fit = max(sub, (usable_vmem - slack) // row_bytes)
        tn_hbm = max(sub, (2 << 20) // (c * in_itemsize))
        tn = min(tn_fit, tn_hbm, _round_up(n, sub))
        tn = max(sub, tn // sub * sub)
    else:
        tn = max(sub, min(_round_up(int(tile_n), sub), _round_up(n, sub)))

    n_tiles = pl.cdiv(n, tn)
    n_par_eff = max(1, min(int(n_par), n_tiles))
    n_inner = pl.cdiv(n_tiles, n_par_eff)

    kernel = functools.partial(
        _dsc_loss_kernel, alpha=float(alpha), smooth=float(smooth),
        n_total=n, tile_n=tn, n_inner=n_inner)

    def io_map(p, i):
        # Clamp out-of-range tiles (when n_tiles doesn't split evenly across
        # cores) to the last real tile; the kernel's row mask zeroes them out.
        t = p * n_inner + i
        return (jnp.minimum(t, n_tiles - 1), 0)

    vmem_limit = int(min(max(usable_vmem, 32 * 1024 * 1024),
                         100 * 1024 * 1024))

    partial = pl.pallas_call(
        kernel,
        out_shape=jax.ShapeDtypeStruct((n_par_eff, 1, 1), jnp.float32),
        grid_spec=pltpu.PrefetchScalarGridSpec(
            num_scalar_prefetch=0,
            grid=(n_par_eff, n_inner),
            in_specs=[
                pl.BlockSpec((tn, c), io_map),   # logits tile
                pl.BlockSpec((tn, 1), io_map),   # target indices tile
            ],
            out_specs=pl.BlockSpec((1, 1, 1), lambda p, i: (p, 0, 0)),
            scratch_shapes=[pltpu.VMEM((1, 1), jnp.float32)],
        ),
        compiler_params=pltpu.CompilerParams(
            dimension_semantics=("parallel", "arbitrary"),
            vmem_limit_bytes=vmem_limit),
    )(logits, targets2d)

    total = jnp.sum(partial)
    if reduction == "mean":
        return total / jnp.float32(n)
    elif reduction == "sum":
        return total
    else:
        raise NotImplementedError(f"Reduction `{reduction}` is not supported.")


def _reference(logits, targets, alpha=1.0, smooth=1.0, reduction="mean"):
    probs = jax.nn.softmax(logits.astype(jnp.float32), axis=1)
    p = jnp.take_along_axis(probs, targets[:, None].astype(jnp.int32), axis=1)
    pf = jnp.power(1.0 - p, alpha) * p
    loss = 1.0 - (2.0 * pf + smooth) / (pf + 1.0 + smooth)
    return loss.mean() if reduction == "mean" else loss.sum()


if __name__ == "__main__":
    key = jax.random.PRNGKey(0)
    k1, k2, k3, k4, k5, k6, k7, k8 = jax.random.split(key, 8)

    # Case 1: shapes consistent with a BERT classification head
    # (N = batch*seq rows = 16, C = num labels = 32), auto-sized tile.
    N, C = 16, 32
    logits = jax.random.normal(k1, (N, C), dtype=jnp.float32)
    targets = jax.random.randint(k2, (N,), 0, C, dtype=jnp.int32)
    loss = jax.block_until_ready(multi_dsc_loss(logits, targets,
                                                alpha=1.0, smooth=1.0))
    ref = _reference(logits, targets)
    assert jnp.allclose(loss, ref, atol=1e-5, rtol=1e-5), (loss, ref)

    # Case 2: ragged N (not a multiple of the tile), multiple tiles, both grid
    # axes exercised (tail masking + clamped overhang tile), explicit tile_n.
    N2, C2 = 50, 32
    logits2 = jax.random.normal(k3, (N2, C2), dtype=jnp.float32)
    targets2 = jax.random.randint(k4, (N2,), 0, C2, dtype=jnp.int32)
    loss2 = jax.block_until_ready(multi_dsc_loss(logits2, targets2, alpha=1.0,
                                                 smooth=1.0, tile_n=8, n_par=2))
    ref2 = _reference(logits2, targets2)
    assert jnp.allclose(loss2, ref2, atol=1e-5, rtol=1e-5), (loss2, ref2)

    # Case 3: bf16 logits end-to-end (kernel upcasts to f32); tile rounded to
    # the bf16 sublane multiple (16).
    N3, C3 = 64, 32
    logits3 = jax.random.normal(k5, (N3, C3), dtype=jnp.float32).astype(jnp.bfloat16)
    targets3 = jax.random.randint(k6, (N3,), 0, C3, dtype=jnp.int32)
    loss3 = jax.block_until_ready(multi_dsc_loss(logits3, targets3,
                                                 alpha=1.0, smooth=1.0))
    ref3 = _reference(logits3.astype(jnp.float32), targets3)
    assert jnp.allclose(loss3, ref3, atol=1e-5, rtol=1e-5), (loss3, ref3)

    # Case 4: alpha=2 (specialized repeated-multiply path) + sum reduction,
    # C not a multiple of 128 (full-extent last dim block).
    N4, C4 = 40, 16
    logits4 = jax.random.normal(k7, (N4, C4), dtype=jnp.float32)
    targets4 = jax.random.randint(k8, (N4,), 0, C4, dtype=jnp.int32)
    loss4 = jax.block_until_ready(multi_dsc_loss(logits4, targets4, alpha=2.0,
                                                 smooth=1.0, reduction="sum",
                                                 tile_n=16, n_par=2))
    ref4 = _reference(logits4, targets4, alpha=2.0, reduction="sum")
    assert jnp.allclose(loss4, ref4, atol=1e-4, rtol=1e-5), (loss4, ref4)

    print("KERNEL_OK")
</pallas_src>

<mosaic_0001>
module attributes {stable_mosaic.version = 11 : i64} {
  func.func @_dsc_loss_kernel(%arg0: i32, %arg1: i32, %arg2: memref<16x32xf32, #tpu.memory_space<vmem>>, %arg3: memref<16x1xi32, #tpu.memory_space<vmem>>, %arg4: memref<1x1x1xf32, #tpu.memory_space<vmem>>, %arg5: memref<1x1xf32, #tpu.memory_space<vmem>>) attributes {dimension_semantics = [#tpu.dimension_semantics<parallel>, #tpu.dimension_semantics<arbitrary>], iteration_bounds = array<i64: 1, 1>, scalar_prefetch = 0 : i64, scratch_operands = 1 : i64, tpu.core_type = #tpu.core_type<tc>, window_params = [{transform_indices = @transform_0, window_bounds = array<i64: 16, 32>}, {transform_indices = @transform_1, window_bounds = array<i64: 16, 1>}, {transform_indices = @transform_2, window_bounds = array<i64: 1, 1, 1>}]} {
    %c0_i32 = arith.constant 0 : i32
    %0 = arith.cmpi eq, %arg1, %c0_i32 : i32
    %1 = arith.extui %0 : i1 to i32
    %c0_i32_0 = arith.constant 0 : i32
    %2 = arith.cmpi ne, %1, %c0_i32_0 : i32
    scf.if %2 {
      %cst_23 = arith.constant 0.000000e+00 : f32
      %54 = vector.broadcast %cst_23 : f32 to vector<1x1xf32>
      %c0_24 = arith.constant 0 : index
      %c0_25 = arith.constant 0 : index
      %55 = vector.load %arg5[%c0_24, %c0_25] : memref<1x1xf32, #tpu.memory_space<vmem>>, vector<1x1xf32>
      tpu.vector_store %arg5[%c0_24, %c0_25], %54 {strides = array<i32>} : memref<1x1xf32, #tpu.memory_space<vmem>>, vector<1x1xf32>,
    } else {
    }
    %c0 = arith.constant 0 : index
    %c0_1 = arith.constant 0 : index
    %3 = vector.load %arg2[%c0, %c0_1] : memref<16x32xf32, #tpu.memory_space<vmem>>, vector<16x32xf32>
    %c0_2 = arith.constant 0 : index
    %c0_3 = arith.constant 0 : index
    %4 = vector.load %arg3[%c0_2, %c0_3] : memref<16x1xi32, #tpu.memory_space<vmem>>, vector<16x1xi32>
    %cst = arith.constant dense<0xFF800000> : vector<16xf32>
    %5 = vector.multi_reduction <maximumf>, %3, %cst [1] : vector<16x32xf32> to vector<16xf32>
    %6 = vector.shape_cast %5 : vector<16xf32> to vector<16x1xf32>
    %7 = vector.broadcast %6 : vector<16x1xf32> to vector<16x32xf32>
    %8 = arith.subf %3, %7 : vector<16x32xf32>
    %9 = math.exp %8 : vector<16x32xf32>
    %10 = tpu.iota {dimensions = array<i32: 1>} : vector<16x32xi32>
    %11 = vector.broadcast %4 : vector<16x1xi32> to vector<16x32xi32>
    %12 = arith.cmpi eq, %10, %11 : vector<16x32xi32>
    %cst_4 = arith.constant 0.000000e+00 : f32
    %13 = vector.broadcast %cst_4 : f32 to vector<16x32xf32>
    %14 = arith.select %12, %9, %13 : vector<16x32xi1>, vector<16x32xf32>
    %cst_5 = arith.constant dense<0.000000e+00> : vector<16xf32>
    %15 = vector.multi_reduction <add>, %14, %cst_5 [1] : vector<16x32xf32> to vector<16xf32>
    %16 = vector.shape_cast %15 : vector<16xf32> to vector<16x1xf32>
    %cst_6 = arith.constant dense<0.000000e+00> : vector<16xf32>
    %17 = vector.multi_reduction <add>, %9, %cst_6 [1] : vector<16x32xf32> to vector<16xf32>
    %18 = vector.shape_cast %17 : vector<16xf32> to vector<16x1xf32>
    %19 = arith.divf %16, %18 : vector<16x1xf32>
    %cst_7 = arith.constant 1.000000e+00 : f32
    %20 = vector.broadcast %cst_7 : f32 to vector<16x1xf32>
    %21 = arith.subf %20, %19 : vector<16x1xf32>
    %cst_8 = arith.constant 0.000000e+00 : f32
    %22 = vector.broadcast %cst_8 : f32 to vector<16x1xf32>
    %23 = arith.maximumf %21, %22 : vector<16x1xf32>
    %24 = arith.mulf %23, %19 : vector<16x1xf32>
    %cst_9 = arith.constant 2.000000e+00 : f32
    %25 = vector.broadcast %cst_9 : f32 to vector<16x1xf32>
    %26 = arith.mulf %25, %24 : vector<16x1xf32>
    %cst_10 = arith.constant 1.000000e+00 : f32
    %27 = vector.broadcast %cst_10 : f32 to vector<16x1xf32>
    %28 = arith.addf %26, %27 : vector<16x1xf32>
    %cst_11 = arith.constant 1.000000e+00 : f32
    %29 = vector.broadcast %cst_11 : f32 to vector<16x1xf32>
    %30 = arith.addf %24, %29 : vector<16x1xf32>
    %cst_12 = arith.constant 1.000000e+00 : f32
    %31 = vector.broadcast %cst_12 : f32 to vector<16x1xf32>
    %32 = arith.addf %30, %31 : vector<16x1xf32>
    %33 = arith.divf %28, %32 : vector<16x1xf32>
    %cst_13 = arith.constant 1.000000e+00 : f32
    %34 = vector.broadcast %cst_13 : f32 to vector<16x1xf32>
    %35 = arith.subf %34, %33 : vector<16x1xf32>
    %c1_i32 = arith.constant 1 : i32
    %36 = arith.muli %arg0, %c1_i32 : i32
    %37 = arith.addi %36, %arg1 : i32
    %c16_i32 = arith.constant 16 : i32
    %38 = arith.muli %37, %c16_i32 : i32
    %39 = tpu.iota {dimensions = array<i32: 0>} : vector<16x1xi32>
    %40 = vector.broadcast %38 : i32 to vector<16x1xi32>
    %41 = arith.addi %40, %39 : vector<16x1xi32>
    %c16_i32_14 = arith.constant 16 : i32
    %42 = vector.broadcast %c16_i32_14 : i32 to vector<16x1xi32>
    %43 = arith.cmpi slt, %41, %42 : vector<16x1xi32>
    %cst_15 = arith.constant 0.000000e+00 : f32
    %44 = vector.broadcast %cst_15 : f32 to vector<16x1xf32>
    %45 = arith.select %43, %35, %44 : vector<16x1xi1>, vector<16x1xf32>
    %c0_16 = arith.constant 0 : index
    %c0_17 = arith.constant 0 : index
    %46 = vector.load %arg5[%c0_16, %c0_17] : memref<1x1xf32, #tpu.memory_space<vmem>>, vector<1x1xf32>
    %cst_18 = arith.constant dense<0.000000e+00> : vector<1xf32>
    %47 = vector.multi_reduction <add>, %45, %cst_18 [0] : vector<16x1xf32> to vector<1xf32>
    %48 = vector.shape_cast %47 : vector<1xf32> to vector<1x1xf32>
    %49 = arith.addf %46, %48 : vector<1x1xf32>
    %c0_19 = arith.constant 0 : index
    %c0_20 = arith.constant 0 : index
    %50 = vector.load %arg5[%c0_19, %c0_20] : memref<1x1xf32, #tpu.memory_space<vmem>>, vector<1x1xf32>
    tpu.vector_store %arg5[%c0_19, %c0_20], %49 {strides = array<i32>} : memref<1x1xf32, #tpu.memory_space<vmem>>, vector<1x1xf32>,
    %c0_i32_21 = arith.constant 0 : i32
    %51 = arith.cmpi eq, %arg1, %c0_i32_21 : i32
    %52 = arith.extui %51 : i1 to i32
    %c0_i32_22 = arith.constant 0 : i32
    %53 = arith.cmpi ne, %52, %c0_i32_22 : i32
    scf.if %53 {
      %c0_23 = arith.constant 0 : index
      %c0_24 = arith.constant 0 : index
      %54 = vector.load %arg5[%c0_23, %c0_24] : memref<1x1xf32, #tpu.memory_space<vmem>>, vector<1x1xf32>
      %55 = vector.shape_cast %54 : vector<1x1xf32> to vector<1x1x1xf32>
      %c0_25 = arith.constant 0 : index
      %c0_26 = arith.constant 0 : index
      %c0_27 = arith.constant 0 : index
      %56 = vector.load %arg4[%c0_25, %c0_26, %c0_27] : memref<1x1x1xf32, #tpu.memory_space<vmem>>, vector<1x1x1xf32>
      tpu.vector_store %arg4[%c0_25, %c0_26, %c0_27], %55 {strides = array<i32>} : memref<1x1x1xf32, #tpu.memory_space<vmem>>, vector<1x1x1xf32>,
    } else {
    }
    return
  }
  func.func @transform_0(%arg0: i32, %arg1: i32) -> (i32, i32) {
    %c1_i32 = arith.constant 1 : i32
    %0 = arith.muli %arg0, %c1_i32 : i32
    %1 = arith.addi %0, %arg1 : i32
    %c0_i32 = arith.constant 0 : i32
    %2 = arith.minsi %1, %c0_i32 : i32
    %c0_i32_0 = arith.constant 0 : i32
    %c0_i32_1 = arith.constant 0 : i32
    return %2, %c0_i32_0 : i32, i32
  }
  func.func @transform_1(%arg0: i32, %arg1: i32) -> (i32, i32) {
    %c1_i32 = arith.constant 1 : i32
    %0 = arith.muli %arg0, %c1_i32 : i32
    %1 = arith.addi %0, %arg1 : i32
    %c0_i32 = arith.constant 0 : i32
    %2 = arith.minsi %1, %c0_i32 : i32
    %c0_i32_0 = arith.constant 0 : i32
    %c0_i32_1 = arith.constant 0 : i32
    return %2, %c0_i32_0 : i32, i32
  }
  func.func @transform_2(%arg0: i32, %arg1: i32) -> (i32, i32, i32) {
    %c0_i32 = arith.constant 0 : i32
    %c0_i32_0 = arith.constant 0 : i32
    %c0_i32_1 = arith.constant 0 : i32
    return %arg0, %c0_i32, %c0_i32_0 : i32, i32, i32
  }
}

</mosaic_0001>

<llo_original>
// kernel: tpu_custom_call.1
$region0: #{tpu_custom_call.1}
  #allocation0 [shape = 'u32[]', space=smem, size = 0x4, offset = 0x4, fixed_abs, tag = 'smem constant byte address 0x4 - core index']
  #allocation1 [shape = 'u32[72,128]{1,0:T(1,128)}', space=vmem, size = 0x9000, scoped, tag = 'internal scratch']
  #allocation2 [shape = 'f32[1,1]{1,0:T(1,128)}', space=vmem, size = 0x200, scoped, tag = 'scratch operand']
  %s0 = inlined_call_operand.vmem [shape: f32[16,32], index: 0, kind: input, shape index: {}]
  %s1 = inlined_call_operand.vmem [shape: s32[16,1], index: 1, kind: input, shape index: {}]
  %s2 = inlined_call_operand.hbm [shape: f32[1,1,1], index: 2, kind: output, shape index: {}]
  %s3 = sld [smem:[#allocation0]]
  $region26: #{tpu_custom_call.1} parent=0
    _
  %s5 = ssub.s32 1, %s3
  %s6 = scalar_select 0, %s5, %s3
  $region1: #{tpu_custom_call.1} parent=0
    #allocation3 [shape = 'u8[512]{0}', space=vmem, size = 0x400, scoped, tag = 'output window, operand 0, single buffered']
    #allocation4 [shape = 's32[1]{0}', space=sflag, size = 0x4, scoped, tag = 'scoped memory for tpu_custom_call.1']
    %7 = vsyncpa [#allocation4], 0
    // Predicated region
    $region2: #{tpu_custom_call.1} parent=1 // pred_check
      _
    $region3: #{tpu_custom_call.1} parent=1 // pred_check_branch
      %9 = sbr.rel (0) target = $region5
    $region4: #{tpu_custom_call.1} parent=1 // pred_region
      %s10 = sadd.s32 0, 0
      %p11 = scmp.lt.s32.totalorder %s10, 0
      %s12 = scalar_select %p11, %s10, 0
      %s13 = smul.u32 2, %s12
      %p14 = scmp.lt.s32.totalorder %s13, 1
      %s15 = scalar_select %p14, %s13, 1
      %s16 = smul.addr %s15, 8
      %s17 = scalar_lea.vmem %s0, %s16
      %s18 = sadd.s32 0, 0
      %p19 = scmp.lt.s32.totalorder %s18, 0
      %s20 = scalar_select %p19, %s18, 0
      %s21 = smul.u32 2, %s20
    $region5: #{tpu_custom_call.1} parent=1 // pred_fallthru
      _
    // Predicated region
    $region6: #{tpu_custom_call.1} parent=1 // pred_check
      _
    $region7: #{tpu_custom_call.1} parent=1 // pred_check_branch
      %23 = sbr.rel (0) target = $region9
    $region8: #{tpu_custom_call.1} parent=1 // pred_region
      %s24 = sadd.s32 0, 0
      %p25 = scmp.lt.s32.totalorder %s24, 0
      %s26 = scalar_select %p25, %s24, 0
      %s27 = smul.u32 2, %s26
      %p28 = scmp.lt.s32.totalorder %s27, 1
      %s29 = scalar_select %p28, %s27, 1
      %s30 = smul.addr %s29, 8
      %s31 = scalar_lea.vmem %s1, %s30
      %s32 = sadd.s32 0, 0
      %p33 = scmp.lt.s32.totalorder %s32, 0
      %s34 = scalar_select %p33, %s32, 0
      %s35 = smul.u32 2, %s34
    $region9: #{tpu_custom_call.1} parent=1 // pred_fallthru
      _
    %s36 = sadd.s32 0, 0
    %p37 = scmp.lt.s32.totalorder %s36, 0
    %s38 = scalar_select %p37, %s36, 0
    %s39 = smul.u32 2, %s38
    %p40 = scmp.lt.s32.totalorder %s39, 1
    %s41 = scalar_select %p40, %s39, 1
    %s42 = smul.addr %s41, 8
    %s43 = scalar_lea.vmem %s0, %s42
    %s44 = sadd.s32 0, 0
    %p45 = scmp.lt.s32.totalorder %s44, 0
    %s46 = scalar_select %p45, %s44, 0
    %s47 = smul.u32 2, %s46
    %p48 = scmp.lt.s32.totalorder %s47, 1
    %s49 = scalar_select %p48, %s47, 1
    %s50 = smul.addr %s49, 8
    %s51 = scalar_lea.vmem %s1, %s50
    %s52 = sadd.s32 0, 0
    %p53 = scmp.lt.s32.totalorder %s52, 0
    %s54 = scalar_select %p53, %s52, 0
    %s55 = smul.u32 2, %s54
    %p56 = scmp.lt.s32.totalorder %s55, 1
    %s57 = scalar_select %p56, %s55, 1
    %s58 = smul.addr %s57, 8
    %s59 = scalar_lea.vmem %s0, %s58
    %s60 = sadd.s32 0, 0
    %p61 = scmp.lt.s32.totalorder %s60, 0
    %s62 = scalar_select %p61, %s60, 0
    %s63 = smul.u32 2, %s62
    %s64 = sadd.s32 0, 0
    %p65 = scmp.lt.s32.totalorder %s64, 0
    %s66 = scalar_select %p65, %s64, 0
    %s67 = smul.u32 2, %s66
    %p68 = scmp.lt.s32.totalorder %s67, 1
    %s69 = scalar_select %p68, %s67, 1
    %s70 = smul.addr %s69, 8
    %s71 = scalar_lea.vmem %s1, %s70
    %s72 = sadd.s32 0, 0
    %p73 = scmp.lt.s32.totalorder %s72, 0
    %s74 = scalar_select %p73, %s72, 0
    %s75 = smul.u32 2, %s74
    %p76 = scmp.eq.s32.totalorder 0, 0
    // Predicated region
    $region10: #{tpu_custom_call.1} parent=1 // pred_check
      %p77 = pneg %p76
    $region11: #{tpu_custom_call.1} parent=1 // pred_check_branch
      %79 = sbr.rel (%p77) target = $region13
    $region12: #{tpu_custom_call.1} parent=1 // pred_region
      %vm80 = vcmask 0
      %81 = vst.msk [vmem:[#allocation2] sm:$0x1] %vm80, 0.0
    $region13: #{tpu_custom_call.1} parent=1 // pred_fallthru
      _
    %v82 = vld [vmem:[%s59] sm:$0xff]
    %v83 = vld [vmem:[%s59 + $0x8] sm:$0xff]
    %v84 = vld [vmem:[%s71] sm:$0xff]
    %v85 = vld [vmem:[%s71 + $0x8] sm:$0xff]
    %vm86 = vcmask 261120
    %v87 = vsel %vm86, %v82, -inf
    %88 = vmax.xlane.f32.xlu0 %v87
    %v89 = vpop.xlane.xlu0 %88
    %v90 = vsel %vm86, %v83, -inf
    %91 = vmax.xlane.f32.xlu0 %v90
    %v92 = vpop.xlane.xlu0 %91
    %v93 = vsub.f32 %v82, %v89
    %v94 = vsub.f32 %v83, %v92
    %v95 = vmul.f32 %v93, 1.442695
    %v96 = vpow.pop %v95
    %v97 = vmul.f32 %v94, 1.442695
    %v98 = vpow.pop %v97
    %v99 = vlaneseq
    %v100 = vand.u32 %v99, 127
    %101 = vset.pattern.permute.xlu0 0
    %102 = vperm.xlu0 %101, %v84
    %v103 = vpop.permute.xlu0 %102
    %104 = vset.pattern.permute.xlu0 0
    %105 = vperm.xlu0 %104, %v85
    %v106 = vpop.permute.xlu0 %105
    %vm107 = vcmp.eq.s32.totalorder %v100, %v103
    %vm108 = vcmp.eq.s32.totalorder %v100, %v106
    %v109 = vsel %vm107, %v96, 0.0
    %v110 = vsel %vm108, %v98, 0.0
    %v111 = vsel %vm86, %v109, 0.0
    %112 = vadd.xlane.f32.xlu0 %v111
    %v113 = vpop.xlane.xlu0 %112
    %v114 = vsel %vm86, %v110, 0.0
    %115 = vadd.xlane.f32.xlu0 %v114
    %v116 = vpop.xlane.xlu0 %115
    %v117 = vsel %vm86, %v96, 0.0
    %118 = vadd.xlane.f32.xlu0 %v117
    %v119 = vpop.xlane.xlu0 %118
    %v120 = vsel %vm86, %v98, 0.0
    %121 = vadd.xlane.f32.xlu0 %v120
    %v122 = vpop.xlane.xlu0 %121
    %v123 = vrcp.pop %v119
    %v124 = vmul.f32 %v119, %v123
    %v125 = vsub.f32 1.0, %v124
    %v126 = vmul.f32 %v123, %v125
    %v127 = vadd.f32 %v123, %v126
    %vm128 = vweird.f32 %v119
    %vm129 = vweird.f32 %v123
    %vm130 = vmor %vm128, %vm129
    %v131 = vsel %vm130, %v123, %v127
    %v132 = vand.u32 2147483647, %v119
    %vm133 = vcmp.eq.f32.partialorder %v132, 8.507059e+37
    %v134 = vand.u32 %v119, 2147483648
    %v135 = vor.u32 1.1754944e-38, %v134
    %v136 = vsel %vm133, %v135, %v131
    %v137 = vmul.f32 %v113, %v136
    %v138 = vrcp.pop %v122
    %v139 = vmul.f32 %v122, %v138
    %v140 = vsub.f32 1.0, %v139
    %v141 = vmul.f32 %v138, %v140
    %v142 = vadd.f32 %v138, %v141
    %vm143 = vweird.f32 %v122
    %vm144 = vweird.f32 %v138
    %vm145 = vmor %vm143, %vm144
    %v146 = vsel %vm145, %v138, %v142
    %v147 = vand.u32 2147483647, %v122
    %vm148 = vcmp.eq.f32.partialorder %v147, 8.507059e+37
    %v149 = vand.u32 %v122, 2147483648
    %v150 = vor.u32 1.1754944e-38, %v149
    %v151 = vsel %vm148, %v150, %v146
    %v152 = vmul.f32 %v116, %v151
    %v153 = vsub.f32 1.0, %v137
    %v154 = vsub.f32 1.0, %v152
    %v155 = vmax.f32 %v153, 0.0
    %v156 = vmax.f32 %v154, 0.0
    %v157 = vmul.f32 %v155, %v137
    %v158 = vmul.f32 %v156, %v152
    %v159 = vmul.f32 %v157, 2.0
    %v160 = vmul.f32 %v158, 2.0
    %v161 = vadd.f32 %v159, 1.0
    %v162 = vadd.f32 %v160, 1.0
    %v163 = vadd.f32 %v157, 1.0
    %v164 = vadd.f32 %v158, 1.0
    %v165 = vadd.f32 %v163, 1.0
    %v166 = vadd.f32 %v164, 1.0
    %v167 = vrcp.pop %v165
    %v168 = vmul.f32 %v165, %v167
    %v169 = vsub.f32 1.0, %v168
    %v170 = vmul.f32 %v167, %v169
    %v171 = vadd.f32 %v167, %v170
    %vm172 = vweird.f32 %v165
    %vm173 = vweird.f32 %v167
    %vm174 = vmor %vm172, %vm173
    %v175 = vsel %vm174, %v167, %v171
    %v176 = vand.u32 2147483647, %v165
    %vm177 = vcmp.eq.f32.partialorder %v176, 8.507059e+37
    %v178 = vand.u32 %v165, 2147483648
    %v179 = vor.u32 1.1754944e-38, %v178
    %v180 = vsel %vm177, %v179, %v175
    %v181 = vmul.f32 %v161, %v180
    %v182 = vrcp.pop %v166
    %v183 = vmul.f32 %v166, %v182
    %v184 = vsub.f32 1.0, %v183
    %v185 = vmul.f32 %v182, %v184
    %v186 = vadd.f32 %v182, %v185
    %vm187 = vweird.f32 %v166
    %vm188 = vweird.f32 %v182
    %vm189 = vmor %vm187, %vm188
    %v190 = vsel %vm189, %v182, %v186
    %v191 = vand.u32 2147483647, %v166
    %vm192 = vcmp.eq.f32.partialorder %v191, 8.507059e+37
    %v193 = vand.u32 %v166, 2147483648
    %v194 = vor.u32 1.1754944e-38, %v193
    %v195 = vsel %vm192, %v194, %v190
    %v196 = vmul.f32 %v162, %v195
    %v197 = vsub.f32 1.0, %v181
    %v198 = vsub.f32 1.0, %v196
    %s199 = sadd.s32 0, 0
    %s200 = smul.u32 %s199, 16
    %v201 = vlaneseq
    %v202 = vshrl.u32 %v201, 7
    %v203 = vadd.s32 %v202, 8
    %v204 = vstv %s200
    %v205 = vadd.s32 %v204, %v202
    %v206 = vadd.s32 %v204, %v203
    %vm207 = vcmp.lt.s32.totalorder %v205, 16
    %vm208 = vcmp.lt.s32.totalorder %v206, 16
    %v209 = vsel %vm207, %v197, 0.0
    %v210 = vsel %vm208, %v198, 0.0
    %v211 = vld [vmem:[#allocation2] sm:$0x1]
    %v212 = vadd.f32 %v209, %v210
    %v213 = vrot.slane %v212, 4
    %v214 = vadd.f32 %v212, %v213
    %v215 = vrot.slane %v214, 2
    %v216 = vadd.f32 %v214, %v215
    %v217 = vrot.slane %v216, 1
    %v218 = vadd.f32 %v216, %v217
    %v219 = vadd.f32 %v211, %v218
    %vm220 = vcmask 0
    %221 = vst.msk [vmem:[#allocation2] sm:$0x1] %vm220, %v219
    // Predicated region
    $region14: #{tpu_custom_call.1} parent=1 // pred_check
      %p222 = pneg %p76
    $region15: #{tpu_custom_call.1} parent=1 // pred_check_branch
      %224 = sbr.rel (%p222) target = $region17
    $region16: #{tpu_custom_call.1} parent=1 // pred_region
      %v225 = vld [vmem:[#allocation2] sm:$0x1]
      %226 = vst.msk [vmem:[#allocation3] sm:$0x1] %vm220, %v225
    $region17: #{tpu_custom_call.1} parent=1 // pred_fallthru
      _
    // Predicated region
    $region18: #{tpu_custom_call.1} parent=1 // pred_check
      _
    $region19: #{tpu_custom_call.1} parent=1 // pred_check_branch
      %228 = sbr.rel (0) target = $region21
    $region20: #{tpu_custom_call.1} parent=1 // pred_region
      %230 = vsyncadd [#allocation4], 0
      %s232 = sshll.u32 [#allocation3], 4
      %s233 = int_to_ptr.vmem [resolvable:$true] %s232
      %s234 = sshll.u32 %s2, 4
      %s235 = int_to_ptr.hbm [resolvable:$true] %s234
      %237 = dma.vmem_to_hbm [thread:$0]  %s233, 16, %s235, [#allocation4]
    $region21: #{tpu_custom_call.1} parent=1 // pred_fallthru
      _
    // Predicated region
    $region22: #{tpu_custom_call.1} parent=1 // pred_check
      _
    $region23: #{tpu_custom_call.1} parent=1 // pred_check_branch
      %239 = sbr.rel (0) target = $region25
    $region24: #{tpu_custom_call.1} parent=1 // pred_region
      %241 = dma.done [#allocation4], 16
    $region25: #{tpu_custom_call.1} parent=1 // pred_fallthru
      _
    %242 = vsyncpa [#allocation4], 1

</llo_original>
